<compile_context>
chip_gen: v7x
topology: tpu7x:2x2x1
jax: 0.10.0
libtpu: 0.0.40
codegen_flags: <defaults>
</compile_context>

<pallas_src>
import jax
import jax.numpy as jnp
from jax.experimental import pallas as pl
from jax.experimental.pallas import tpu as pltpu


def _round_up(x, m):
    return (x + m - 1) // m * m


def _graphsage_score_kernel(f1_ref, f2_ref, wenc_ref, w_ref, out_ref):
    # f1_ref  : (TN, Fp) bf16   pair1 feature tile (streamed, double-buffered)
    # f2_ref  : (TN, Fp) bf16   pair2 feature tile (streamed, double-buffered)
    # wenc_ref: (Fp, Dp) bf16   encoder weight, pre-transposed (resident)
    # w_ref   : (Dp, Dp) f32    bilinear weight W^T, pre-transposed (resident)
    # out_ref : (1, TN)  f32    lane-dense score tile
    wenc = wenc_ref[...]

    # e1  = enc(pair1).T tile = f1 @ W_enc^T          (TN, Dp), f32 accumulate
    # e2t = enc(pair2).T tile = f2 @ W_enc^T          (TN, Dp), f32 accumulate
    e1 = jnp.dot(f1_ref[...], wenc, preferred_element_type=jnp.float32)
    e2t = jnp.dot(f2_ref[...], wenc, preferred_element_type=jnp.float32)

    # (W @ e2)^T tile = e2t @ W^T   (w_ref already holds W^T)   (TN, Dp), f32
    we2t = jnp.dot(e2t, w_ref[...], preferred_element_type=jnp.float32)

    # diag(e1 @ W @ e2)[i] == sum_d e1[i, d] * (e2t @ W^T)[i, d]
    scores = jnp.sum(e1 * we2t, axis=-1)          # (TN,)  last-axis reduce (XLU)
    out_ref[...] = scores[None, :].astype(out_ref.dtype)


def supervised_graphsage_forward(pair1_feats, pair2_feats, w_enc, weight, *, tn=2048):
    """Returns scores of shape (N,), float32."""
    n, f = pair1_feats.shape
    d, f2 = w_enc.shape
    assert f2 == f and weight.shape == (d, d)

    # Lane-/MXU-friendly padded dims (zero padding is exact for these matmuls).
    fp = _round_up(f, 128)
    dp = _round_up(d, 128)

    np128 = _round_up(n, 128)
    tn = min(_round_up(tn, 128), np128)          # TN multiple of 128, <= padded N
    # v7x megacore: prefer >= 2 grid steps when there is enough work to split.
    if np128 // tn < 2 and np128 >= 256:
        tn = _round_up((np128 + 1) // 2, 128)
    np_ = _round_up(np128, tn)
    num_tiles = np_ // tn

    bf16 = jnp.bfloat16
    f32 = jnp.float32

    # Streamed features in bf16 (halves HBM bytes); weights pre-transposed.
    f1p = jnp.zeros((np_, fp), bf16).at[:n, :f].set(pair1_feats.astype(bf16))
    f2p = jnp.zeros((np_, fp), bf16).at[:n, :f].set(pair2_feats.astype(bf16))
    wenc_t = jnp.zeros((fp, dp), bf16).at[:f, :d].set(w_enc.T.astype(bf16))
    w_t = jnp.zeros((dp, dp), f32).at[:d, :d].set(weight.T.astype(f32))

    # Advisory cost estimate so XLA can overlap the wrapper pad/cast ops.
    flops = num_tiles * (2 * 2 * tn * fp * dp + 2 * tn * dp * dp)
    bytes_accessed = (
        2 * np_ * fp * 2        # streamed bf16 feature tiles (pair1 + pair2)
        + fp * dp * 2           # resident encoder weight (bf16)
        + dp * dp * 4           # resident bilinear weight (f32)
        + np_ * 4               # scores out
    )
    cost = pl.CostEstimate(flops=flops, transcendentals=0,
                           bytes_accessed=bytes_accessed)

    out = pl.pallas_call(
        _graphsage_score_kernel,
        out_shape=jax.ShapeDtypeStruct((1, np_), jnp.float32),
        grid_spec=pltpu.PrefetchScalarGridSpec(
            num_scalar_prefetch=0,
            grid=(num_tiles,),
            in_specs=[
                pl.BlockSpec((tn, fp), lambda i: (i, 0)),   # streamed pair1 tile
                pl.BlockSpec((tn, fp), lambda i: (i, 0)),   # streamed pair2 tile
                pl.BlockSpec((fp, dp), lambda i: (0, 0)),   # resident W_enc^T
                pl.BlockSpec((dp, dp), lambda i: (0, 0)),   # resident W^T
            ],
            out_specs=pl.BlockSpec((1, tn), lambda i: (0, i)),  # lane-dense scores
        ),
        compiler_params=pltpu.CompilerParams(
            dimension_semantics=("parallel",),
            # Ample for TN<=4096 here (streamed bf16 tiles + f32 intermediates
            # stay well under 16 MiB); safe on v7x's 64 MiB physical VMEM.
            vmem_limit_bytes=32 * 1024 * 1024,
        ),
        cost_estimate=cost,
    )(f1p, f2p, wenc_t, w_t)
    return out[0, :n]


def _reference_forward(pair1_feats, pair2_feats, w_enc, weight):
    # Matches the kernel's numerics: features/encoder weight rounded to bf16,
    # all accumulation in f32, bilinear weight kept f32.
    hp = jax.lax.Precision.HIGHEST
    p1 = pair1_feats.astype(jnp.bfloat16).astype(jnp.float32)
    p2 = pair2_feats.astype(jnp.bfloat16).astype(jnp.float32)
    we = w_enc.astype(jnp.bfloat16).astype(jnp.float32)
    e1 = jnp.matmul(we, p1.T, precision=hp).T      # enc(pair1).t()  (N, D)
    e2 = jnp.matmul(we, p2.T, precision=hp)        # enc(pair2)      (D, N)
    return jnp.diag(jnp.matmul(e1, jnp.matmul(weight, e2, precision=hp),
                               precision=hp))


if __name__ == "__main__":
    num_nodes = 8       # nodes per pair batch
    feat_dim = 16       # raw feature dim consumed by the encoder
    embed_dim = 32      # enc.embed_dim

    key = jax.random.PRNGKey(0)
    k1, k2, k3, k4 = jax.random.split(key, 4)

    pair1_feats = jax.random.normal(k1, (num_nodes, feat_dim), dtype=jnp.float32)
    pair2_feats = jax.random.normal(k2, (num_nodes, feat_dim), dtype=jnp.float32)

    # Deterministic encoder weight (stand-in for enc's linear map).
    w_enc = jax.random.normal(k3, (embed_dim, feat_dim), dtype=jnp.float32) * 0.1

    # self.weight: (embed_dim, embed_dim) with Xavier-uniform init.
    bound = (6.0 / (embed_dim + embed_dim)) ** 0.5
    weight = jax.random.uniform(
        k4, (embed_dim, embed_dim), dtype=jnp.float32, minval=-bound, maxval=bound
    )

    scores = supervised_graphsage_forward(pair1_feats, pair2_feats, w_enc, weight)
    jax.block_until_ready(scores)

    ref = _reference_forward(pair1_feats, pair2_feats, w_enc, weight)
    assert scores.shape == (num_nodes,)
    assert jnp.allclose(scores, ref, atol=1e-3, rtol=1e-3), (scores, ref)

    print("KERNEL_OK")
</pallas_src>

<mosaic_0001>
module attributes {stable_mosaic.version = 11 : i64} {
  func.func @_graphsage_score_kernel(%arg0: i32, %arg1: memref<128x128xbf16, #tpu.memory_space<vmem>>, %arg2: memref<128x128xbf16, #tpu.memory_space<vmem>>, %arg3: memref<128x128xbf16, #tpu.memory_space<vmem>>, %arg4: memref<128x128xf32, #tpu.memory_space<vmem>>, %arg5: memref<1x128xf32, #tpu.memory_space<vmem>>) attributes {dimension_semantics = [#tpu.dimension_semantics<parallel>], iteration_bounds = array<i64: 1>, scalar_prefetch = 0 : i64, scratch_operands = 0 : i64, tpu.core_type = #tpu.core_type<tc>, window_params = [{transform_indices = @transform_0, window_bounds = array<i64: 128, 128>}, {transform_indices = @transform_1, window_bounds = array<i64: 128, 128>}, {pipeline_mode = #tpu.pipeline_mode<synchronous>, transform_indices = @transform_2, window_bounds = array<i64: 128, 128>}, {pipeline_mode = #tpu.pipeline_mode<synchronous>, transform_indices = @transform_3, window_bounds = array<i64: 128, 128>}, {transform_indices = @transform_4, window_bounds = array<i64: 1, 128>}]} {
    %c0 = arith.constant 0 : index
    %c0_0 = arith.constant 0 : index
    %0 = vector.load %arg3[%c0, %c0_0] : memref<128x128xbf16, #tpu.memory_space<vmem>>, vector<128x128xbf16>
    %c0_1 = arith.constant 0 : index
    %c0_2 = arith.constant 0 : index
    %1 = vector.load %arg1[%c0_1, %c0_2] : memref<128x128xbf16, #tpu.memory_space<vmem>>, vector<128x128xbf16>
    %cst = arith.constant dense<0.000000e+00> : vector<128x128xf32>
    %2 = tpu.matmul %1, %0, %cst {dimension_numbers = #tpu.dot_dimension_numbers<[1], [0], [0], [1], [0, 0, 1, 1], [], []>} : vector<128x128xbf16>, vector<128x128xbf16>, vector<128x128xf32> -> vector<128x128xf32>
    %c0_3 = arith.constant 0 : index
    %c0_4 = arith.constant 0 : index
    %3 = vector.load %arg2[%c0_3, %c0_4] : memref<128x128xbf16, #tpu.memory_space<vmem>>, vector<128x128xbf16>
    %cst_5 = arith.constant dense<0.000000e+00> : vector<128x128xf32>
    %4 = tpu.matmul %3, %0, %cst_5 {dimension_numbers = #tpu.dot_dimension_numbers<[1], [0], [0], [1], [0, 0, 1, 1], [], []>} : vector<128x128xbf16>, vector<128x128xbf16>, vector<128x128xf32> -> vector<128x128xf32>
    %c0_6 = arith.constant 0 : index
    %c0_7 = arith.constant 0 : index
    %5 = vector.load %arg4[%c0_6, %c0_7] : memref<128x128xf32, #tpu.memory_space<vmem>>, vector<128x128xf32>
    %cst_8 = arith.constant dense<0.000000e+00> : vector<128x128xf32>
    %6 = tpu.matmul %4, %5, %cst_8 {dimension_numbers = #tpu.dot_dimension_numbers<[1], [0], [0], [1], [0, 0, 1, 1], [], []>} : vector<128x128xf32>, vector<128x128xf32>, vector<128x128xf32> -> vector<128x128xf32>
    %7 = arith.mulf %2, %6 : vector<128x128xf32>
    %cst_9 = arith.constant dense<0.000000e+00> : vector<128xf32>
    %8 = vector.multi_reduction <add>, %7, %cst_9 [1] : vector<128x128xf32> to vector<128xf32>
    %9 = vector.shape_cast %8 : vector<128xf32> to vector<1x128xf32>
    %c0_10 = arith.constant 0 : index
    %c0_11 = arith.constant 0 : index
    %10 = vector.load %arg5[%c0_10, %c0_11] : memref<1x128xf32, #tpu.memory_space<vmem>>, vector<1x128xf32>
    tpu.vector_store %arg5[%c0_10, %c0_11], %9 {strides = array<i32>} : memref<1x128xf32, #tpu.memory_space<vmem>>, vector<1x128xf32>,
    return
  }
  func.func @transform_0(%arg0: i32) -> (i32, i32) {
    %c0_i32 = arith.constant 0 : i32
    %c0_i32_0 = arith.constant 0 : i32
    return %arg0, %c0_i32 : i32, i32
  }
  func.func @transform_1(%arg0: i32) -> (i32, i32) {
    %c0_i32 = arith.constant 0 : i32
    %c0_i32_0 = arith.constant 0 : i32
    return %arg0, %c0_i32 : i32, i32
  }
  func.func @transform_2(%arg0: i32) -> (i32, i32) {
    %c0_i32 = arith.constant 0 : i32
    %c0_i32_0 = arith.constant 0 : i32
    %c0_i32_1 = arith.constant 0 : i32
    return %c0_i32, %c0_i32_0 : i32, i32
  }
  func.func @transform_3(%arg0: i32) -> (i32, i32) {
    %c0_i32 = arith.constant 0 : i32
    %c0_i32_0 = arith.constant 0 : i32
    %c0_i32_1 = arith.constant 0 : i32
    return %c0_i32, %c0_i32_0 : i32, i32
  }
  func.func @transform_4(%arg0: i32) -> (i32, i32) {
    %c0_i32 = arith.constant 0 : i32
    %c0_i32_0 = arith.constant 0 : i32
    return %c0_i32, %arg0 : i32, i32
  }
}

</mosaic_0001>

<llo_original>
// kernel: tpu_custom_call.1
$region0: #{tpu_custom_call.1}
  #allocation0 [shape = 'u32[]', space=smem, size = 0x4, offset = 0x4, fixed_abs, tag = 'smem constant byte address 0x4 - core index']
  #allocation1 [shape = 'u32[144,128]{1,0:T(1,128)}', space=vmem, size = 0x12000, scoped, tag = 'internal scratch']
  %s0 = inlined_call_operand.hbm [shape: bf16[128,128], index: 0, kind: input, shape index: {}]
  %s1 = inlined_call_operand.hbm [shape: bf16[128,128], index: 1, kind: input, shape index: {}]
  %s2 = inlined_call_operand.hbm [shape: bf16[128,128], index: 2, kind: input, shape index: {}]
  %s3 = inlined_call_operand.hbm [shape: f32[128,128], index: 3, kind: input, shape index: {}]
  %s4 = inlined_call_operand.hbm [shape: f32[1,128], index: 4, kind: output, shape index: {}]
  %s5 = sld [smem:[#allocation0]]
  $region42: #{tpu_custom_call.1} parent=0
    _
  %s7 = ssub.s32 1, %s5
  %s8 = scalar_select 0, %s7, %s5
  $region1: #{tpu_custom_call.1} parent=0
    #allocation2 [shape = 'u8[32768]{0}', space=vmem, size = 0x8000, scoped, tag = 'input window, operand 0, single buffered']
    #allocation3 [shape = 's32[1]{0}', space=sflag, size = 0x4, scoped, tag = 'scoped memory for tpu_custom_call.1']
    #allocation4 [shape = 's32[1]{0}', space=sflag, size = 0x4, scoped, tag = 'scoped memory for tpu_custom_call.1']
    #allocation5 [shape = 'u8[32768]{0}', space=vmem, size = 0x8000, scoped, tag = 'input window, operand 1, single buffered']
    #allocation6 [shape = 's32[1]{0}', space=sflag, size = 0x4, scoped, tag = 'scoped memory for tpu_custom_call.1']
    #allocation7 [shape = 'u8[32768]{0}', space=vmem, size = 0x8000, scoped, tag = 'input window, operand 2, single buffered']
    #allocation8 [shape = 'u8[65536]{0}', space=vmem, size = 0x10000, scoped, tag = 'input window, operand 3, single buffered']
    #allocation9 [shape = 's32[1]{0}', space=sflag, size = 0x4, scoped, tag = 'scoped memory for tpu_custom_call.1']
    #allocation10 [shape = 'u8[512]{0}', space=vmem, size = 0x400, scoped, tag = 'output window, operand 0, single buffered']
    %9 = vsyncpa [#allocation3], 0
    %10 = vsyncpa [#allocation6], 0
    %11 = vsyncpa [#allocation9], 0
    %12 = vsyncpa [#allocation4], 0
    // Predicated region
    $region2: #{tpu_custom_call.1} parent=1 // pred_check
      _
    $region3: #{tpu_custom_call.1} parent=1 // pred_check_branch
      %14 = sbr.rel (0) target = $region5
    $region4: #{tpu_custom_call.1} parent=1 // pred_region
      %s16 = ssub.s32 1024, 1024
      %17 = vsyncadd [#allocation3], %s16
      %s18 = sshll.u32 [#allocation2], 4
      %s19 = int_to_ptr.vmem [resolvable:$true] %s18
      %24 = dma.hbm_to_vmem [thread:$0]  %s0, 1024, %s19, [#allocation3], 64, 64, 4
    $region5: #{tpu_custom_call.1} parent=1 // pred_fallthru
      _
    // Predicated region
    $region6: #{tpu_custom_call.1} parent=1 // pred_check
      _
    $region7: #{tpu_custom_call.1} parent=1 // pred_check_branch
      %26 = sbr.rel (0) target = $region9
    $region8: #{tpu_custom_call.1} parent=1 // pred_region
      %s28 = ssub.s32 1024, 1024
      %29 = vsyncadd [#allocation6], %s28
      %s30 = sshll.u32 [#allocation5], 4
      %s31 = int_to_ptr.vmem [resolvable:$true] %s30
      %36 = dma.hbm_to_vmem [thread:$0]  %s1, 1024, %s31, [#allocation6], 64, 64, 4
    $region9: #{tpu_custom_call.1} parent=1 // pred_fallthru
      _
    // Predicated region
    $region10: #{tpu_custom_call.1} parent=1 // pred_check
      _
    $region11: #{tpu_custom_call.1} parent=1 // pred_check_branch
      %38 = sbr.rel (0) target = $region13
    $region12: #{tpu_custom_call.1} parent=1 // pred_region
      %s40 = ssub.s32 1024, 1024
      %41 = vsyncadd [#allocation6], %s40
      %s42 = sshll.u32 [#allocation7], 4
      %s43 = int_to_ptr.vmem [resolvable:$true] %s42
      %48 = dma.hbm_to_vmem [thread:$0]  %s2, 1024, %s43, [#allocation6], 64, 64, 4
    $region13: #{tpu_custom_call.1} parent=1 // pred_fallthru
      _
    // Predicated region
    $region14: #{tpu_custom_call.1} parent=1 // pred_check
      _
    $region15: #{tpu_custom_call.1} parent=1 // pred_check_branch
      %50 = sbr.rel (0) target = $region17
    $region16: #{tpu_custom_call.1} parent=1 // pred_region
      %s52 = ssub.s32 2048, 2048
      %53 = vsyncadd [#allocation9], %s52
      %s54 = sshll.u32 [#allocation8], 4
      %s55 = int_to_ptr.vmem [resolvable:$true] %s54
      %60 = dma.hbm_to_vmem [thread:$0]  %s3, 2048, %s55, [#allocation9], 128, 128, 8
    $region17: #{tpu_custom_call.1} parent=1 // pred_fallthru
      _
    // Predicated region
    $region18: #{tpu_custom_call.1} parent=1 // pred_check
      _
    $region19: #{tpu_custom_call.1} parent=1 // pred_check_branch
      %62 = sbr.rel (0) target = $region21
    $region20: #{tpu_custom_call.1} parent=1 // pred_region
      %63 = dma.done [#allocation3], 1024
    $region21: #{tpu_custom_call.1} parent=1 // pred_fallthru
      _
    // Predicated region
    $region22: #{tpu_custom_call.1} parent=1 // pred_check
      _
    $region23: #{tpu_custom_call.1} parent=1 // pred_check_branch
      %65 = sbr.rel (0) target = $region25
    $region24: #{tpu_custom_call.1} parent=1 // pred_region
      %66 = dma.done [#allocation6], 1024
    $region25: #{tpu_custom_call.1} parent=1 // pred_fallthru
      _
    // Predicated region
    $region26: #{tpu_custom_call.1} parent=1 // pred_check
      _
    $region27: #{tpu_custom_call.1} parent=1 // pred_check_branch
      %68 = sbr.rel (0) target = $region29
    $region28: #{tpu_custom_call.1} parent=1 // pred_region
      %69 = dma.done [#allocation6], 1024
    $region29: #{tpu_custom_call.1} parent=1 // pred_fallthru
      _
    // Predicated region
    $region30: #{tpu_custom_call.1} parent=1 // pred_check
      _
    $region31: #{tpu_custom_call.1} parent=1 // pred_check_branch
      %71 = sbr.rel (0) target = $region33
    $region32: #{tpu_custom_call.1} parent=1 // pred_region
      %72 = dma.done [#allocation9], 2048
    $region33: #{tpu_custom_call.1} parent=1 // pred_fallthru
      _
    %v74 = vld [vmem:[#allocation7] sm:$0xf]
    %v75 = vld [vmem:[#allocation7 + $0x4] sm:$0xf]
    %v76 = vld [vmem:[#allocation7 + $0x8] sm:$0xf]
    %v77 = vld [vmem:[#allocation7 + $0xc] sm:$0xf]
    %v78 = vld [vmem:[#allocation7 + $0x10] sm:$0xf]
    %v79 = vld [vmem:[#allocation7 + $0x14] sm:$0xf]
    %v80 = vld [vmem:[#allocation7 + $0x18] sm:$0xf]
    %v81 = vld [vmem:[#allocation7 + $0x1c] sm:$0xf]
    %v82 = vld [vmem:[#allocation7 + $0x20] sm:$0xf]
    %v83 = vld [vmem:[#allocation7 + $0x24] sm:$0xf]
    %v84 = vld [vmem:[#allocation7 + $0x28] sm:$0xf]
    %v85 = vld [vmem:[#allocation7 + $0x2c] sm:$0xf]
    %v86 = vld [vmem:[#allocation7 + $0x30] sm:$0xf]
    %v87 = vld [vmem:[#allocation7 + $0x34] sm:$0xf]
    %v88 = vld [vmem:[#allocation7 + $0x38] sm:$0xf]
    %v89 = vld [vmem:[#allocation7 + $0x3c] sm:$0xf]
    %v90 = vld [vmem:[#allocation2] sm:$0xf]
    %v91 = vld [vmem:[#allocation2 + $0x4] sm:$0xf]
    %v92 = vld [vmem:[#allocation2 + $0x8] sm:$0xf]
    %v93 = vld [vmem:[#allocation2 + $0xc] sm:$0xf]
    %v94 = vld [vmem:[#allocation2 + $0x10] sm:$0xf]
    %v95 = vld [vmem:[#allocation2 + $0x14] sm:$0xf]
    %v96 = vld [vmem:[#allocation2 + $0x18] sm:$0xf]
    %v97 = vld [vmem:[#allocation2 + $0x1c] sm:$0xf]
    %v98 = vld [vmem:[#allocation2 + $0x20] sm:$0xf]
    %v99 = vld [vmem:[#allocation2 + $0x24] sm:$0xf]
    %v100 = vld [vmem:[#allocation2 + $0x28] sm:$0xf]
    %v101 = vld [vmem:[#allocation2 + $0x2c] sm:$0xf]
    %v102 = vld [vmem:[#allocation2 + $0x30] sm:$0xf]
    %v103 = vld [vmem:[#allocation2 + $0x34] sm:$0xf]
    %v104 = vld [vmem:[#allocation2 + $0x38] sm:$0xf]
    %v105 = vld [vmem:[#allocation2 + $0x3c] sm:$0xf]
    %v122 = vunpack.c.l.b16 %v90
    %v123 = vunpack.c.l.b16 %v91
    %v124 = vunpack.c.l.b16 %v92
    %v125 = vunpack.c.l.b16 %v93
    %v126 = vunpack.c.l.b16 %v94
    %v127 = vunpack.c.l.b16 %v95
    %v128 = vunpack.c.l.b16 %v96
    %v129 = vunpack.c.l.b16 %v97
    %v130 = vunpack.c.l.b16 %v98
    %v131 = vunpack.c.l.b16 %v99
    %v132 = vunpack.c.l.b16 %v100
    %v133 = vunpack.c.l.b16 %v101
    %v134 = vunpack.c.l.b16 %v102
    %v135 = vunpack.c.l.b16 %v103
    %v136 = vunpack.c.l.b16 %v104
    %v137 = vunpack.c.l.b16 %v105
    %v138 = vpack.c.b16 %v123, %v122
    %v139 = vpack.c.b16 %v125, %v124
    %v140 = vpack.c.b16 %v127, %v126
    %v141 = vpack.c.b16 %v129, %v128
    %v142 = vpack.c.b16 %v131, %v130
    %v143 = vpack.c.b16 %v133, %v132
    %v144 = vpack.c.b16 %v135, %v134
    %v145 = vpack.c.b16 %v137, %v136
    %v170 = vunpack.c.l.b16 %v74
    %v171 = vunpack.c.l.b16 %v75
    %v172 = vunpack.c.l.b16 %v76
    %v173 = vunpack.c.l.b16 %v77
    %v174 = vunpack.c.l.b16 %v78
    %v175 = vunpack.c.l.b16 %v79
    %v176 = vunpack.c.l.b16 %v80
    %v177 = vunpack.c.l.b16 %v81
    %v178 = vunpack.c.l.b16 %v82
    %v179 = vunpack.c.l.b16 %v83
    %v180 = vunpack.c.l.b16 %v84
    %v181 = vunpack.c.l.b16 %v85
    %v182 = vunpack.c.l.b16 %v86
    %v183 = vunpack.c.l.b16 %v87
    %v184 = vunpack.c.l.b16 %v88
    %v185 = vunpack.c.l.b16 %v89
    %v186 = vpack.c.b16 %v171, %v170
    %v187 = vpack.c.b16 %v173, %v172
    %v188 = vpack.c.b16 %v175, %v174
    %v189 = vpack.c.b16 %v177, %v176
    %v190 = vpack.c.b16 %v179, %v178
    %v191 = vpack.c.b16 %v181, %v180
    %v192 = vpack.c.b16 %v183, %v182
    %v193 = vpack.c.b16 %v185, %v184
    %202 = vmatprep.subr.bf16.mxu0 0
    %203 = vmatpush1.bf16.msra.mxu0 %v186
    %204 = vmatprep.subr.bf16.mxu0 0
    %205 = vmatpush1.bf16.msra.mxu0 %v187
    %206 = vmatprep.subr.bf16.mxu0 0
    %207 = vmatpush1.bf16.msra.mxu0 %v188
    %208 = vmatprep.subr.bf16.mxu0 0
    %209 = vmatpush1.bf16.msra.mxu0 %v189
    %210 = vmatprep.subr.bf16.mxu0 0
    %211 = vmatpush1.bf16.msra.mxu0 %v190
    %212 = vmatprep.subr.bf16.mxu0 0
    %213 = vmatpush1.bf16.msra.mxu0 %v191
    %214 = vmatprep.subr.bf16.mxu0 0
    %215 = vmatpush1.bf16.msra.mxu0 %v192
    %216 = vmatprep.subr.bf16.mxu0 0
    %217 = vmatpush1.bf16.msra.mxu0 %v193
    %218 = vmatprep.subr.bf16.mxu0 0
    %219 = vmatpush1.bf16.msra.mxu0 0
    %220 = vmatprep.subr.bf16.mxu0 0
    %221 = vmatpush1.bf16.msra.mxu0 0
    %222 = vmatprep.subr.bf16.mxu0 0
    %223 = vmatpush1.bf16.msra.mxu0 0
    %224 = vmatprep.subr.bf16.mxu0 0
    %225 = vmatpush1.bf16.msra.mxu0 0
    %226 = vmatprep.subr.bf16.mxu0 0
    %227 = vmatpush1.bf16.msra.mxu0 0
    %228 = vmatprep.subr.bf16.mxu0 0
    %229 = vmatpush1.bf16.msra.mxu0 0
    %230 = vmatprep.subr.bf16.mxu0 0
    %231 = vmatpush1.bf16.msra.mxu0 0
    %232 = vmatprep.subr.bf16.mxu0 0
    %233 = vmatpush1.bf16.msra.mxu0 0
    %234 = vmatprep.mubr.bf16.mxu0 0
    %235 = vmatmul.mubr.bf16.gmra.mrb[0].mxu0 %v138
    %v236 = vpop.f32.mrb[0].mxu0
    %v237 = vadd.f32 0.0, %v236
    %v238 = vpop.f32.mrb[0].mxu0
    %v239 = vpop.f32.mrb[0].mxu0
    %v240 = vadd.f32 0.0, %v239
    %v241 = vpop.f32.mrb[0].mxu0
    %242 = vmatprep.mubr.bf16.mxu0 0
    %243 = vmatmul.mubr.bf16.gmra.mrb[0].mxu0 %v139
    %v244 = vpop.f32.mrb[0].mxu0
    %v245 = vadd.f32 0.0, %v244
    %v246 = vpop.f32.mrb[0].mxu0
    %v247 = vpop.f32.mrb[0].mxu0
    %v248 = vadd.f32 0.0, %v247
    %v249 = vpop.f32.mrb[0].mxu0
    %250 = vmatprep.mubr.bf16.mxu0 0
    %251 = vmatmul.mubr.bf16.gmra.mrb[0].mxu0 %v140
    %v252 = vpop.f32.mrb[0].mxu0
    %v253 = vadd.f32 0.0, %v252
    %v254 = vpop.f32.mrb[0].mxu0
    %v255 = vpop.f32.mrb[0].mxu0
    %v256 = vadd.f32 0.0, %v255
    %v257 = vpop.f32.mrb[0].mxu0
    %258 = vmatprep.mubr.bf16.mxu0 0
    %259 = vmatmul.mubr.bf16.gmra.mrb[0].mxu0 %v141
    %v260 = vpop.f32.mrb[0].mxu0
    %v261 = vadd.f32 0.0, %v260
    %v262 = vpop.f32.mrb[0].mxu0
    %v263 = vpop.f32.mrb[0].mxu0
    %v264 = vadd.f32 0.0, %v263
    %v265 = vpop.f32.mrb[0].mxu0
    %266 = vmatprep.mubr.bf16.mxu0 0
    %267 = vmatmul.mubr.bf16.gmra.mrb[0].mxu0 %v142
    %v268 = vpop.f32.mrb[0].mxu0
    %v269 = vadd.f32 0.0, %v268
    %v270 = vpop.f32.mrb[0].mxu0
    %v271 = vpop.f32.mrb[0].mxu0
    %v272 = vadd.f32 0.0, %v271
    %v273 = vpop.f32.mrb[0].mxu0
    %274 = vmatprep.mubr.bf16.mxu0 0
    %275 = vmatmul.mubr.bf16.gmra.mrb[0].mxu0 %v143
    %v276 = vpop.f32.mrb[0].mxu0
    %v277 = vadd.f32 0.0, %v276
    %v278 = vpop.f32.mrb[0].mxu0
    %v279 = vpop.f32.mrb[0].mxu0
    %v280 = vadd.f32 0.0, %v279
    %v281 = vpop.f32.mrb[0].mxu0
    %282 = vmatprep.mubr.bf16.mxu0 0
    %283 = vmatmul.mubr.bf16.gmra.mrb[0].mxu0 %v144
    %v284 = vpop.f32.mrb[0].mxu0
    %v285 = vadd.f32 0.0, %v284
    %v286 = vpop.f32.mrb[0].mxu0
    %v287 = vpop.f32.mrb[0].mxu0
    %v288 = vadd.f32 0.0, %v287
    %v289 = vpop.f32.mrb[0].mxu0
    %290 = vmatprep.mubr.bf16.mxu0 0
    %291 = vmatmul.mubr.bf16.gmra.mrb[0].mxu0 %v145
    %v292 = vpop.f32.mrb[0].mxu0
    %v293 = vadd.f32 0.0, %v292
    %v294 = vpop.f32.mrb[0].mxu0
    %v295 = vpop.f32.mrb[0].mxu0
    %v296 = vadd.f32 0.0, %v295
    %v297 = vpop.f32.mrb[0].mxu0
    %298 = vdwg.mxu0
    %v299 = vld [vmem:[#allocation5] sm:$0xf]
    %v300 = vld [vmem:[#allocation5 + $0x4] sm:$0xf]
    %v301 = vld [vmem:[#allocation5 + $0x8] sm:$0xf]
    %v302 = vld [vmem:[#allocation5 + $0xc] sm:$0xf]
    %v303 = vld [vmem:[#allocation5 + $0x10] sm:$0xf]
    %v304 = vld [vmem:[#allocation5 + $0x14] sm:$0xf]
    %v305 = vld [vmem:[#allocation5 + $0x18] sm:$0xf]
    %v306 = vld [vmem:[#allocation5 + $0x1c] sm:$0xf]
    %v307 = vld [vmem:[#allocation5 + $0x20] sm:$0xf]
    %v308 = vld [vmem:[#allocation5 + $0x24] sm:$0xf]
    %v309 = vld [vmem:[#allocation5 + $0x28] sm:$0xf]
    %v310 = vld [vmem:[#allocation5 + $0x2c] sm:$0xf]
    %v311 = vld [vmem:[#allocation5 + $0x30] sm:$0xf]
    %v312 = vld [vmem:[#allocation5 + $0x34] sm:$0xf]
    %v313 = vld [vmem:[#allocation5 + $0x38] sm:$0xf]
    %v314 = vld [vmem:[#allocation5 + $0x3c] sm:$0xf]
    %v331 = vunpack.c.l.b16 %v299
    %v332 = vunpack.c.l.b16 %v300
    %v333 = vunpack.c.l.b16 %v301
    %v334 = vunpack.c.l.b16 %v302
    %v335 = vunpack.c.l.b16 %v303
    %v336 = vunpack.c.l.b16 %v304
    %v337 = vunpack.c.l.b16 %v305
    %v338 = vunpack.c.l.b16 %v306
    %v339 = vunpack.c.l.b16 %v307
    %v340 = vunpack.c.l.b16 %v308
    %v341 = vunpack.c.l.b16 %v309
    %v342 = vunpack.c.l.b16 %v310
    %v343 = vunpack.c.l.b16 %v311
    %v344 = vunpack.c.l.b16 %v312
    %v345 = vunpack.c.l.b16 %v313
    %v346 = vunpack.c.l.b16 %v314
    %v347 = vpack.c.b16 %v332, %v331
    %v348 = vpack.c.b16 %v334, %v333
    %v349 = vpack.c.b16 %v336, %v335
    %v350 = vpack.c.b16 %v338, %v337
    %v351 = vpack.c.b16 %v340, %v339
    %v352 = vpack.c.b16 %v342, %v341
    %v353 = vpack.c.b16 %v344, %v343
    %v354 = vpack.c.b16 %v346, %v345
    %363 = vmatprep.subr.bf16.mxu0 0
    %364 = vmatpush1.bf16.msra.mxu0 %v186
    %365 = vmatprep.subr.bf16.mxu0 0
    %366 = vmatpush1.bf16.msra.mxu0 %v187
    %367 = vmatprep.subr.bf16.mxu0 0
    %368 = vmatpush1.bf16.msra.mxu0 %v188
    %369 = vmatprep.subr.bf16.mxu0 0
    %370 = vmatpush1.bf16.msra.mxu0 %v189
    %371 = vmatprep.subr.bf16.mxu0 0
    %372 = vmatpush1.bf16.msra.mxu0 %v190
    %373 = vmatprep.subr.bf16.mxu0 0
    %374 = vmatpush1.bf16.msra.mxu0 %v191
    %375 = vmatprep.subr.bf16.mxu0 0
    %376 = vmatpush1.bf16.msra.mxu0 %v192
    %377 = vmatprep.subr.bf16.mxu0 0
    %378 = vmatpush1.bf16.msra.mxu0 %v193
    %379 = vmatprep.subr.bf16.mxu0 0
    %380 = vmatpush1.bf16.msra.mxu0 0
    %381 = vmatprep.subr.bf16.mxu0 0
    %382 = vmatpush1.bf16.msra.mxu0 0
    %383 = vmatprep.subr.bf16.mxu0 0
    %384 = vmatpush1.bf16.msra.mxu0 0
    %385 = vmatprep.subr.bf16.mxu0 0
    %386 = vmatpush1.bf16.msra.mxu0 0
    %387 = vmatprep.subr.bf16.mxu0 0
    %388 = vmatpush1.bf16.msra.mxu0 0
    %389 = vmatprep.subr.bf16.mxu0 0
    %390 = vmatpush1.bf16.msra.mxu0 0
    %391 = vmatprep.subr.bf16.mxu0 0
    %392 = vmatpush1.bf16.msra.mxu0 0
    %393 = vmatprep.subr.bf16.mxu0 0
    %394 = vmatpush1.bf16.msra.mxu0 0
    %395 = vmatprep.mubr.bf16.mxu0 0
    %396 = vmatmul.mubr.bf16.gmra.mrb[0].mxu0 %v347
    %v397 = vpop.f32.mrb[0].mxu0
    %v398 = vadd.f32 0.0, %v397
    %v399 = vpop.f32.mrb[0].mxu0
    %v400 = vpop.f32.mrb[0].mxu0
    %v401 = vadd.f32 0.0, %v400
    %v402 = vpop.f32.mrb[0].mxu0
    %403 = vmatprep.mubr.bf16.mxu0 0
    %404 = vmatmul.mubr.bf16.gmra.mrb[0].mxu0 %v348
    %v405 = vpop.f32.mrb[0].mxu0
    %v406 = vadd.f32 0.0, %v405
    %v407 = vpop.f32.mrb[0].mxu0
    %v408 = vpop.f32.mrb[0].mxu0
    %v409 = vadd.f32 0.0, %v408
    %v410 = vpop.f32.mrb[0].mxu0
    %411 = vmatprep.mubr.bf16.mxu0 0
    %412 = vmatmul.mubr.bf16.gmra.mrb[0].mxu0 %v349
    %v413 = vpop.f32.mrb[0].mxu0
    %v414 = vadd.f32 0.0, %v413
    %v415 = vpop.f32.mrb[0].mxu0
    %v416 = vpop.f32.mrb[0].mxu0
    %v417 = vadd.f32 0.0, %v416
    %v418 = vpop.f32.mrb[0].mxu0
    %419 = vmatprep.mubr.bf16.mxu0 0
    %420 = vmatmul.mubr.bf16.gmra.mrb[0].mxu0 %v350
    %v421 = vpop.f32.mrb[0].mxu0
    %v422 = vadd.f32 0.0, %v421
    %v423 = vpop.f32.mrb[0].mxu0
    %v424 = vpop.f32.mrb[0].mxu0
    %v425 = vadd.f32 0.0, %v424
    %v426 = vpop.f32.mrb[0].mxu0
    %427 = vmatprep.mubr.bf16.mxu0 0
    %428 = vmatmul.mubr.bf16.gmra.mrb[0].mxu0 %v351
    %v429 = vpop.f32.mrb[0].mxu0
    %v430 = vadd.f32 0.0, %v429
    %v431 = vpop.f32.mrb[0].mxu0
    %v432 = vpop.f32.mrb[0].mxu0
    %v433 = vadd.f32 0.0, %v432
    %v434 = vpop.f32.mrb[0].mxu0
    %435 = vmatprep.mubr.bf16.mxu0 0
    %436 = vmatmul.mubr.bf16.gmra.mrb[0].mxu0 %v352
    %v437 = vpop.f32.mrb[0].mxu0
    %v438 = vadd.f32 0.0, %v437
    %v439 = vpop.f32.mrb[0].mxu0
    %v440 = vpop.f32.mrb[0].mxu0
    %v441 = vadd.f32 0.0, %v440
    %v442 = vpop.f32.mrb[0].mxu0
    %443 = vmatprep.mubr.bf16.mxu0 0
    %444 = vmatmul.mubr.bf16.gmra.mrb[0].mxu0 %v353
    %v445 = vpop.f32.mrb[0].mxu0
    %v446 = vadd.f32 0.0, %v445
    %v447 = vpop.f32.mrb[0].mxu0
    %v448 = vpop.f32.mrb[0].mxu0
    %v449 = vadd.f32 0.0, %v448
    %v450 = vpop.f32.mrb[0].mxu0
    %451 = vmatprep.mubr.bf16.mxu0 0
    %452 = vmatmul.mubr.bf16.gmra.mrb[0].mxu0 %v354
    %v453 = vpop.f32.mrb[0].mxu0
    %v454 = vadd.f32 0.0, %v453
    %v455 = vpop.f32.mrb[0].mxu0
    %v456 = vpop.f32.mrb[0].mxu0
    %v457 = vadd.f32 0.0, %v456
    %v458 = vpop.f32.mrb[0].mxu0
    %459 = vdwg.mxu0
    %v460 = vld [vmem:[#allocation8] sm:$0xff]
    %v461 = vld [vmem:[#allocation8 + $0x8] sm:$0xff]
    %v462 = vld [vmem:[#allocation8 + $0x10] sm:$0xff]
    %v463 = vld [vmem:[#allocation8 + $0x18] sm:$0xff]
    %v464 = vld [vmem:[#allocation8 + $0x20] sm:$0xff]
    %v465 = vld [vmem:[#allocation8 + $0x28] sm:$0xff]
    %v466 = vld [vmem:[#allocation8 + $0x30] sm:$0xff]
    %v467 = vld [vmem:[#allocation8 + $0x38] sm:$0xff]
    %v468 = vld [vmem:[#allocation8 + $0x40] sm:$0xff]
    %v469 = vld [vmem:[#allocation8 + $0x48] sm:$0xff]
    %v470 = vld [vmem:[#allocation8 + $0x50] sm:$0xff]
    %v471 = vld [vmem:[#allocation8 + $0x58] sm:$0xff]
    %v472 = vld [vmem:[#allocation8 + $0x60] sm:$0xff]
    %v473 = vld [vmem:[#allocation8 + $0x68] sm:$0xff]
    %v474 = vld [vmem:[#allocation8 + $0x70] sm:$0xff]
    %v475 = vld [vmem:[#allocation8 + $0x78] sm:$0xff]
    %476 = vmatprep.subr.mxu0 0.0
    %477 = vmatpush1.msra.mxu0 %v460
    %478 = vmatprep.subr.mxu0 0.0
    %479 = vmatpush1.msra.mxu0 %v461
    %480 = vmatprep.subr.mxu0 0.0
    %481 = vmatpush1.msra.mxu0 %v462
    %482 = vmatprep.subr.mxu0 0.0
    %483 = vmatpush1.msra.mxu0 %v463
    %484 = vmatprep.subr.mxu0 0.0
    %485 = vmatpush1.msra.mxu0 %v464
    %486 = vmatprep.subr.mxu0 0.0
    %487 = vmatpush1.msra.mxu0 %v465
    %488 = vmatprep.subr.mxu0 0.0
    %489 = vmatpush1.msra.mxu0 %v466
    %490 = vmatprep.subr.mxu0 0.0
    %491 = vmatpush1.msra.mxu0 %v467
    %492 = vmatprep.subr.mxu0 0.0
    %493 = vmatpush1.msra.mxu0 %v468
    %494 = vmatprep.subr.mxu0 0.0
    %495 = vmatpush1.msra.mxu0 %v469
    %496 = vmatprep.subr.mxu0 0.0
    %497 = vmatpush1.msra.mxu0 %v470
    %498 = vmatprep.subr.mxu0 0.0
    %499 = vmatpush1.msra.mxu0 %v471
    %500 = vmatprep.subr.mxu0 0.0
    %501 = vmatpush1.msra.mxu0 %v472
    %502 = vmatprep.subr.mxu0 0.0
    %503 = vmatpush1.msra.mxu0 %v473
    %504 = vmatprep.subr.mxu0 0.0
    %505 = vmatpush1.msra.mxu0 %v474
    %506 = vmatprep.subr.mxu0 0.0
    %507 = vmatpush1.msra.mxu0 %v475
    %508 = vmatprep.subr.mxu0 0.0
    %509 = vmatpush1.msra.mxu0 0.0
    %510 = vmatprep.subr.mxu0 0.0
    %511 = vmatpush1.msra.mxu0 0.0
    %512 = vmatprep.subr.mxu0 0.0
    %513 = vmatpush1.msra.mxu0 0.0
    %514 = vmatprep.subr.mxu0 0.0
    %515 = vmatpush1.msra.mxu0 0.0
    %516 = vmatprep.subr.mxu0 0.0
    %517 = vmatpush1.msra.mxu0 0.0
    %518 = vmatprep.subr.mxu0 0.0
    %519 = vmatpush1.msra.mxu0 0.0
    %520 = vmatprep.subr.mxu0 0.0
    %521 = vmatpush1.msra.mxu0 0.0
    %522 = vmatprep.subr.mxu0 0.0
    %523 = vmatpush1.msra.mxu0 0.0
    %524 = vmatprep.subr.mxu0 0.0
    %525 = vmatpush1.msra.mxu0 0.0
    %526 = vmatprep.subr.mxu0 0.0
    %527 = vmatpush1.msra.mxu0 0.0
    %528 = vmatprep.subr.mxu0 0.0
    %529 = vmatpush1.msra.mxu0 0.0
    %530 = vmatprep.subr.mxu0 0.0
    %531 = vmatpush1.msra.mxu0 0.0
    %532 = vmatprep.subr.mxu0 0.0
    %533 = vmatpush1.msra.mxu0 0.0
    %534 = vmatprep.subr.mxu0 0.0
    %535 = vmatpush1.msra.mxu0 0.0
    %536 = vmatprep.subr.mxu0 0.0
    %537 = vmatpush1.msra.mxu0 0.0
    %538 = vmatprep.subr.mxu0 0.0
    %539 = vmatpush1.msra.mxu0 0.0
    %540 = vmatprep.mubr.f32.mxu0 0.0
    %541 = vmatmul.mubr.f32.gmra.mrb[0].mxu0 %v398
    %v542 = vpop.f32.mrb[0].mxu0
    %v543 = vadd.f32 0.0, %v542
    %v544 = vpop.f32.mrb[0].mxu0
    %545 = vmatprep.mubr.f32.mxu0 0.0
    %546 = vmatmul.mubr.f32.gmra.mrb[0].mxu0 %v401
    %v547 = vpop.f32.mrb[0].mxu0
    %v548 = vadd.f32 0.0, %v547
    %v549 = vpop.f32.mrb[0].mxu0
    %550 = vmatprep.mubr.f32.mxu0 0.0
    %551 = vmatmul.mubr.f32.gmra.mrb[0].mxu0 %v406
    %v552 = vpop.f32.mrb[0].mxu0
    %v553 = vadd.f32 0.0, %v552
    %v554 = vpop.f32.mrb[0].mxu0
    %555 = vmatprep.mubr.f32.mxu0 0.0
    %556 = vmatmul.mubr.f32.gmra.mrb[0].mxu0 %v409
    %v557 = vpop.f32.mrb[0].mxu0
    %v558 = vadd.f32 0.0, %v557
    %v559 = vpop.f32.mrb[0].mxu0
    %560 = vmatprep.mubr.f32.mxu0 0.0
    %561 = vmatmul.mubr.f32.gmra.mrb[0].mxu0 %v414
    %v562 = vpop.f32.mrb[0].mxu0
    %v563 = vadd.f32 0.0, %v562
    %v564 = vpop.f32.mrb[0].mxu0
    %565 = vmatprep.mubr.f32.mxu0 0.0
    %566 = vmatmul.mubr.f32.gmra.mrb[0].mxu0 %v417
    %v567 = vpop.f32.mrb[0].mxu0
    %v568 = vadd.f32 0.0, %v567
    %v569 = vpop.f32.mrb[0].mxu0
    %570 = vmatprep.mubr.f32.mxu0 0.0
    %571 = vmatmul.mubr.f32.gmra.mrb[0].mxu0 %v422
    %v572 = vpop.f32.mrb[0].mxu0
    %v573 = vadd.f32 0.0, %v572
    %v574 = vpop.f32.mrb[0].mxu0
    %575 = vmatprep.mubr.f32.mxu0 0.0
    %576 = vmatmul.mubr.f32.gmra.mrb[0].mxu0 %v425
    %v577 = vpop.f32.mrb[0].mxu0
    %v578 = vadd.f32 0.0, %v577
    %v579 = vpop.f32.mrb[0].mxu0
    %580 = vmatprep.mubr.f32.mxu0 0.0
    %581 = vmatmul.mubr.f32.gmra.mrb[0].mxu0 %v430
    %v582 = vpop.f32.mrb[0].mxu0
    %v583 = vadd.f32 0.0, %v582
    %v584 = vpop.f32.mrb[0].mxu0
    %585 = vmatprep.mubr.f32.mxu0 0.0
    %586 = vmatmul.mubr.f32.gmra.mrb[0].mxu0 %v433
    %v587 = vpop.f32.mrb[0].mxu0
    %v588 = vadd.f32 0.0, %v587
    %v589 = vpop.f32.mrb[0].mxu0
    %590 = vmatprep.mubr.f32.mxu0 0.0
    %591 = vmatmul.mubr.f32.gmra.mrb[0].mxu0 %v438
    %v592 = vpop.f32.mrb[0].mxu0
    %v593 = vadd.f32 0.0, %v592
    %v594 = vpop.f32.mrb[0].mxu0
    %595 = vmatprep.mubr.f32.mxu0 0.0
    %596 = vmatmul.mubr.f32.gmra.mrb[0].mxu0 %v441
    %v597 = vpop.f32.mrb[0].mxu0
    %v598 = vadd.f32 0.0, %v597
    %v599 = vpop.f32.mrb[0].mxu0
    %600 = vmatprep.mubr.f32.mxu0 0.0
    %601 = vmatmul.mubr.f32.gmra.mrb[0].mxu0 %v446
    %v602 = vpop.f32.mrb[0].mxu0
    %v603 = vadd.f32 0.0, %v602
    %v604 = vpop.f32.mrb[0].mxu0
    %605 = vmatprep.mubr.f32.mxu0 0.0
    %606 = vmatmul.mubr.f32.gmra.mrb[0].mxu0 %v449
    %v607 = vpop.f32.mrb[0].mxu0
    %v608 = vadd.f32 0.0, %v607
    %v609 = vpop.f32.mrb[0].mxu0
    %610 = vmatprep.mubr.f32.mxu0 0.0
    %611 = vmatmul.mubr.f32.gmra.mrb[0].mxu0 %v454
    %v612 = vpop.f32.mrb[0].mxu0
    %v613 = vadd.f32 0.0, %v612
    %v614 = vpop.f32.mrb[0].mxu0
    %615 = vmatprep.mubr.f32.mxu0 0.0
    %616 = vmatmul.mubr.f32.gmra.mrb[0].mxu0 %v457
    %v617 = vpop.f32.mrb[0].mxu0
    %v618 = vadd.f32 0.0, %v617
    %v619 = vpop.f32.mrb[0].mxu0
    %620 = vdwg.mxu0
    %v621 = vmul.f32 %v237, %v543
    %v622 = vmul.f32 %v240, %v548
    %v623 = vmul.f32 %v245, %v553
    %v624 = vmul.f32 %v248, %v558
    %v625 = vmul.f32 %v253, %v563
    %v626 = vmul.f32 %v256, %v568
    %v627 = vmul.f32 %v261, %v573
    %v628 = vmul.f32 %v264, %v578
    %v629 = vmul.f32 %v269, %v583
    %v630 = vmul.f32 %v272, %v588
    %v631 = vmul.f32 %v277, %v593
    %v632 = vmul.f32 %v280, %v598
    %v633 = vmul.f32 %v285, %v603
    %v634 = vmul.f32 %v288, %v608
    %v635 = vmul.f32 %v293, %v613
    %v636 = vmul.f32 %v296, %v618
    %637 = vadd.xlane.f32.xlu0 %v621
    %v638 = vpop.xlane.xlu0 %637
    %639 = vadd.xlane.f32.xlu0 %v622
    %v640 = vpop.xlane.xlu0 %639
    %641 = vadd.xlane.f32.xlu0 %v623
    %v642 = vpop.xlane.xlu0 %641
    %643 = vadd.xlane.f32.xlu0 %v624
    %v644 = vpop.xlane.xlu0 %643
    %645 = vadd.xlane.f32.xlu0 %v625
    %v646 = vpop.xlane.xlu0 %645
    %647 = vadd.xlane.f32.xlu0 %v626
    %v648 = vpop.xlane.xlu0 %647
    %649 = vadd.xlane.f32.xlu0 %v627
    %v650 = vpop.xlane.xlu0 %649
    %651 = vadd.xlane.f32.xlu0 %v628
    %v652 = vpop.xlane.xlu0 %651
    %653 = vadd.xlane.f32.xlu0 %v629
    %v654 = vpop.xlane.xlu0 %653
    %655 = vadd.xlane.f32.xlu0 %v630
    %v656 = vpop.xlane.xlu0 %655
    %657 = vadd.xlane.f32.xlu0 %v631
    %v658 = vpop.xlane.xlu0 %657
    %659 = vadd.xlane.f32.xlu0 %v632
    %v660 = vpop.xlane.xlu0 %659
    %661 = vadd.xlane.f32.xlu0 %v633
    %v662 = vpop.xlane.xlu0 %661
    %663 = vadd.xlane.f32.xlu0 %v634
    %v664 = vpop.xlane.xlu0 %663
    %665 = vadd.xlane.f32.xlu0 %v635
    %v666 = vpop.xlane.xlu0 %665
    %667 = vadd.xlane.f32.xlu0 %v636
    %v668 = vpop.xlane.xlu0 %667
    %v685 = vlaneseq
    %v686 = vand.u32 %v685, 127
    %v687 = vlaneseq
    %v688 = vshrl.u32 %v687, 7
    %v689 = vsub.s32 %v686, %v688
    %v690 = vrot.slane %v638, %v689
    %v691 = vadd.s32 %v686, 4294967288
    %v692 = vlaneseq
    %v693 = vshrl.u32 %v692, 7
    %v694 = vsub.s32 %v691, %v693
    %v695 = vrot.slane %v640, %v694
    %vm696 = vcmask 130112
    %v697 = vsel %vm696, %v695, %v690
    %v698 = vadd.s32 %v686, 4294967280
    %v699 = vlaneseq
    %v700 = vshrl.u32 %v699, 7
    %v701 = vsub.s32 %v698, %v700
    %v702 = vrot.slane %v642, %v701
    %vm703 = vcmask 195712
    %v704 = vsel %vm703, %v702, %v697
    %v705 = vadd.s32 %v686, 4294967272
    %v706 = vlaneseq
    %v707 = vshrl.u32 %v706, 7
    %v708 = vsub.s32 %v705, %v707
    %v709 = vrot.slane %v644, %v708
    %vm710 = vcmask 261312
    %v711 = vsel %vm710, %v709, %v704
    %v712 = vadd.s32 %v686, 4294967264
    %v713 = vlaneseq
    %v714 = vshrl.u32 %v713, 7
    %v715 = vsub.s32 %v712, %v714
    %v716 = vrot.slane %v646, %v715
    %vm717 = vcmask 326912
    %v718 = vsel %vm717, %v716, %v711
    %v719 = vadd.s32 %v686, 4294967256
    %v720 = vlaneseq
    %v721 = vshrl.u32 %v720, 7
    %v722 = vsub.s32 %v719, %v721
    %v723 = vrot.slane %v648, %v722
    %vm724 = vcmask 392512
    %v725 = vsel %vm724, %v723, %v718
    %v726 = vadd.s32 %v686, 4294967248
    %v727 = vlaneseq
    %v728 = vshrl.u32 %v727, 7
    %v729 = vsub.s32 %v726, %v728
    %v730 = vrot.slane %v650, %v729
    %vm731 = vcmask 458112
    %v732 = vsel %vm731, %v730, %v725
    %v733 = vadd.s32 %v686, 4294967240
    %v734 = vlaneseq
    %v735 = vshrl.u32 %v734, 7
    %v736 = vsub.s32 %v733, %v735
    %v737 = vrot.slane %v652, %v736
    %vm738 = vcmask 523712
    %v739 = vsel %vm738, %v737, %v732
    %v740 = vadd.s32 %v686, 4294967232
    %v741 = vlaneseq
    %v742 = vshrl.u32 %v741, 7
    %v743 = vsub.s32 %v740, %v742
    %v744 = vrot.slane %v654, %v743
    %vm745 = vcmask 589312
    %v746 = vsel %vm745, %v744, %v739
    %v747 = vadd.s32 %v686, 4294967224
    %v748 = vlaneseq
    %v749 = vshrl.u32 %v748, 7
    %v750 = vsub.s32 %v747, %v749
    %v751 = vrot.slane %v656, %v750
    %vm752 = vcmask 654912
    %v753 = vsel %vm752, %v751, %v746
    %v754 = vadd.s32 %v686, 4294967216
    %v755 = vlaneseq
    %v756 = vshrl.u32 %v755, 7
    %v757 = vsub.s32 %v754, %v756
    %v758 = vrot.slane %v658, %v757
    %vm759 = vcmask 720512
    %v760 = vsel %vm759, %v758, %v753
    %v761 = vadd.s32 %v686, 4294967208
    %v762 = vlaneseq
    %v763 = vshrl.u32 %v762, 7
    %v764 = vsub.s32 %v761, %v763
    %v765 = vrot.slane %v660, %v764
    %vm766 = vcmask 786112
    %v767 = vsel %vm766, %v765, %v760
    %v768 = vadd.s32 %v686, 4294967200
    %v769 = vlaneseq
    %v770 = vshrl.u32 %v769, 7
    %v771 = vsub.s32 %v768, %v770
    %v772 = vrot.slane %v662, %v771
    %vm773 = vcmask 851712
    %v774 = vsel %vm773, %v772, %v767
    %v775 = vadd.s32 %v686, 4294967192
    %v776 = vlaneseq
    %v777 = vshrl.u32 %v776, 7
    %v778 = vsub.s32 %v775, %v777
    %v779 = vrot.slane %v664, %v778
    %vm780 = vcmask 917312
    %v781 = vsel %vm780, %v779, %v774
    %v782 = vadd.s32 %v686, 4294967184
    %v783 = vlaneseq
    %v784 = vshrl.u32 %v783, 7
    %v785 = vsub.s32 %v782, %v784
    %v786 = vrot.slane %v666, %v785
    %vm787 = vcmask 982912
    %v788 = vsel %vm787, %v786, %v781
    %v789 = vadd.s32 %v686, 4294967176
    %v790 = vlaneseq
    %v791 = vshrl.u32 %v790, 7
    %v792 = vsub.s32 %v789, %v791
    %v793 = vrot.slane %v668, %v792
    %vm794 = vcmask 1048512
    %v795 = vsel %vm794, %v793, %v788
    %797 = vst [vmem:[#allocation10] sm:$0x1] %v795
    // Predicated region
    $region34: #{tpu_custom_call.1} parent=1 // pred_check
      _
    $region35: #{tpu_custom_call.1} parent=1 // pred_check_branch
      %799 = sbr.rel (0) target = $region37
    $region36: #{tpu_custom_call.1} parent=1 // pred_region
      %s801 = ssub.s32 16, 16
      %802 = vsyncadd [#allocation4], %s801
      %s804 = sshll.u32 [#allocation10], 4
      %s805 = int_to_ptr.vmem [resolvable:$true] %s804
      %807 = dma.vmem_to_hbm [thread:$0]  %s805, 16, %s4, [#allocation4]
    $region37: #{tpu_custom_call.1} parent=1 // pred_fallthru
      _
    // Predicated region
    $region38: #{tpu_custom_call.1} parent=1 // pred_check
      _
    $region39: #{tpu_custom_call.1} parent=1 // pred_check_branch
      %809 = sbr.rel (0) target = $region41
    $region40: #{tpu_custom_call.1} parent=1 // pred_region
      %810 = dma.done [#allocation4], 16
    $region41: #{tpu_custom_call.1} parent=1 // pred_fallthru
      _
    %811 = vsyncpa [#allocation3], 1
    %812 = vsyncpa [#allocation6], 1
    %813 = vsyncpa [#allocation9], 1
    %814 = vsyncpa [#allocation4], 1

</llo_original>
